<compile_context>
chip_gen: v5e
topology: v5e:2x2
jax: 0.10.0
libtpu: 0.0.40
codegen_flags: <defaults>
</compile_context>

<pallas_src>
import functools

import jax
import jax.numpy as jnp
from jax.experimental import pallas as pl
from jax.experimental.pallas import tpu as pltpu


LANE = 128            # pad Nenc to a multiple of the lane width
NEG_BIG = -1e30       # bias for padded encoder columns (exp underflows to exactly 0)


def _round_up(x, m):
    return ((x + m - 1) // m) * m


def pointer_scores_kernel(d_ref, et_ref, mask_ref, v_ref, out_ref, s_ref, *,
                          tdec, nenc, eps):
    # Per grid step (b, t):
    #   d_ref    : (1, 1, C, TDEC)    decoder projection tile, channels on sublanes
    #   et_ref   : (1, C, Nenc_p)     encoder projection, transposed (Nenc on lanes),
    #                                 resident across the t axis
    #   mask_ref : (1, TDEC, Nenc_p)  raw 0/1 mask (zero-padded)
    #   v_ref    : (1, C)             f32
    #   out_ref  : (1, TDEC, Nenc_p)  masked log-softmax scores (f32)
    #   s_ref    : (TDEC, Nenc_p)     f32 VMEM scratch for the un-normalized scores
    et = et_ref[0]                      # (C, Nenc_p)
    dt = d_ref[0, 0]                    # (C, TDEC)
    v = v_ref[...].astype(et.dtype)     # (1, C), matches activation dtype for the MXU

    # Row loop: never materializes the (TDEC, C, Nenc_p) tanh tensor.  Static unroll so
    # dt[:, r] is a static-lane broadcast (XLU filler), not a dynamic-lane gather.
    for r in range(tdec):
        th = jnp.tanh(et + dt[:, r:r + 1])                      # (C, Nenc_p)   EUP
        s_ref[r:r + 1, :] = jnp.dot(                            # (1, Nenc_p)   MXU
            v, th, preferred_element_type=jnp.float32)

    # Batched masked log-softmax over the whole (8,128)-aligned tile: bias computed
    # in-kernel from the raw mask, full-vreg VPU/EUP/XLU work, one lane-dense store.
    nenc_p = s_ref.shape[-1]
    col = jax.lax.broadcasted_iota(jnp.int32, (tdec, nenc_p), 1)
    bias = jnp.where(col < nenc,
                     jnp.log(mask_ref[0].astype(jnp.float32) + eps),
                     NEG_BIG)
    x = s_ref[...] + bias                                       # (TDEC, Nenc_p) f32
    m = jnp.max(x, axis=-1, keepdims=True)
    l = jnp.sum(jnp.exp(x - m), axis=-1, keepdims=True)
    out_ref[0, :, :] = x - (jnp.log(l) + m)


def pointer_network(x_decoder, x_encoder, mask, w1, w2, v, eps=1e-16, *,
                    use_bf16=False, max_tdec=64):
    """x_decoder: (B, Ndec, C), x_encoder: (B, Nenc, C), mask: (B, Ndec, Nenc).

    w1, w2: (C, C) nn.Linear weights (out, in); v: (1, C).  Returns (B, Ndec, Nenc)
    log-scores, matching PointerNetwork.forward.  use_bf16=True ships activations and
    the mask in bf16 (v6e/v7x fast path; relaxes accuracy vs the f32 reference).
    """
    B, Ndec, C = x_decoder.shape
    _, Nenc, _ = x_encoder.shape
    assert mask.shape == (B, Ndec, Nenc)

    f32 = jnp.float32
    act_dtype = jnp.bfloat16 if use_bf16 else f32
    act_bytes = 2 if use_bf16 else 4

    x_decoder = x_decoder.astype(f32)
    x_encoder = x_encoder.astype(f32)
    w1 = jnp.asarray(w1, f32)
    w2 = jnp.asarray(w2, f32)
    v = jnp.asarray(v, f32).reshape(1, C)

    # Decoder tile: multiple of 8, as large as max_tdec allows (amortizes per-step cost).
    tdec = max(8, min(_round_up(Ndec, 8), _round_up(max_tdec, 8)))
    ndec_p = _round_up(Ndec, tdec)
    nenc_p = _round_up(Nenc, LANE)
    n_tiles = ndec_p // tdec

    # Hoisted projections (MXU via XLA), emitted directly in the kernel layouts so the
    # wrapper never does a separate transpose pass over the activations in HBM.
    e_t = jnp.einsum("kc,bnc->bkn", w1, x_encoder)                     # (B, C, Nenc)
    e_t = jnp.pad(e_t, ((0, 0), (0, 0), (0, nenc_p - Nenc))).astype(act_dtype)

    xd_p = jnp.pad(x_decoder, ((0, 0), (0, ndec_p - Ndec), (0, 0)))
    xd_p = xd_p.reshape(B, n_tiles, tdec, C)
    d_t4 = jnp.einsum("kc,btnc->btkn", w2, xd_p).astype(act_dtype)     # (B, T, C, TDEC)

    # Raw mask only (log(mask+eps) is computed in-kernel); zero-pad -> padded decoder
    # rows are harmless, padded encoder columns are killed in-kernel with NEG_BIG.
    mask_p = jnp.pad(mask.astype(act_dtype),
                     ((0, 0), (0, ndec_p - Ndec), (0, nenc_p - Nenc)))

    kernel = functools.partial(pointer_scores_kernel, tdec=tdec, nenc=Nenc, eps=eps)

    elems = B * ndec_p * nenc_p
    cost = pl.CostEstimate(
        flops=int(elems * (3 * C + 5)),
        transcendentals=int(elems * (C + 2)),
        bytes_accessed=int(B * C * nenc_p * act_bytes        # e^T (read once per batch)
                           + B * ndec_p * C * act_bytes      # decoder tiles
                           + elems * act_bytes               # mask
                           + C * 4                           # v
                           + elems * 4))                     # output

    out_p = pl.pallas_call(
        kernel,
        out_shape=jax.ShapeDtypeStruct((B, ndec_p, nenc_p), f32),
        grid=(B, n_tiles),
        in_specs=[
            pl.BlockSpec((1, 1, C, tdec), lambda b, t: (b, t, 0, 0)),   # d tile
            pl.BlockSpec((1, C, nenc_p), lambda b, t: (b, 0, 0)),       # e^T (reused over t)
            pl.BlockSpec((1, tdec, nenc_p), lambda b, t: (b, t, 0)),    # raw mask
            pl.BlockSpec((1, C), lambda b, t: (0, 0)),                  # v
        ],
        out_specs=pl.BlockSpec((1, tdec, nenc_p), lambda b, t: (b, t, 0)),
        scratch_shapes=[pltpu.VMEM((tdec, nenc_p), jnp.float32)],
        compiler_params=pltpu.CompilerParams(
            dimension_semantics=("parallel", "parallel"),
            vmem_limit_bytes=32 * 1024 * 1024),
        cost_estimate=cost,
    )(d_t4, e_t, mask_p, v)

    return out_p[:, :Ndec, :Nenc]


def pointer_network_ref(x_decoder, x_encoder, mask, w1, w2, v, eps=1e-16):
    """Pure-JAX reference mirroring the PyTorch forward exactly (f32)."""
    e = x_encoder @ w1.T                                  # (B, Nenc, C)
    d = x_decoder @ w2.T                                  # (B, Ndec, C)
    t = jnp.tanh(d[:, :, None, :] + e[:, None, :, :])     # (B, Ndec, Nenc, C)
    prod = jnp.einsum("bijc,oc->bij", t, v.reshape(1, -1))
    x = prod + jnp.log(mask.astype(jnp.float32) + eps)
    return jax.nn.log_softmax(x, axis=-1)


if __name__ == "__main__":
    B, Ndec, Nenc, C = 2, 12, 20, 32

    key = jax.random.PRNGKey(0)
    k_dec, k_enc, k_mask, k_w1, k_w2, k_v = jax.random.split(key, 6)

    x_decoder = jax.random.normal(k_dec, (B, Ndec, C), jnp.float32)
    x_encoder = jax.random.normal(k_enc, (B, Nenc, C), jnp.float32)

    mask = (jax.random.uniform(k_mask, (B, Ndec, Nenc)) < 0.7).astype(jnp.float32)
    mask = mask.at[:, :, 0].set(1.0)  # ensure at least one valid position per row

    # Deterministic init mimicking nn.Linear's U(-1/sqrt(in), 1/sqrt(in)).
    bound = 1.0 / jnp.sqrt(jnp.float32(C))
    w1 = jax.random.uniform(k_w1, (C, C), jnp.float32, -bound, bound)
    w2 = jax.random.uniform(k_w2, (C, C), jnp.float32, -bound, bound)
    v = jax.random.uniform(k_v, (1, C), jnp.float32, -bound, bound)

    ref = pointer_network_ref(x_decoder, x_encoder, mask, w1, w2, v)

    # Exact path: f32 transport + compute, single decoder tile.
    out = pointer_network(x_decoder, x_encoder, mask, w1, w2, v)
    out = jax.block_until_ready(out)
    assert out.shape == (B, Ndec, Nenc)
    assert jnp.allclose(out, ref, atol=1e-5, rtol=1e-5), "f32 kernel mismatch vs reference"

    # Fast path: bf16 transport/compute (v6e/v7x), forced multi-tile decoder grid.
    out_bf16 = pointer_network(x_decoder, x_encoder, mask, w1, w2, v,
                               use_bf16=True, max_tdec=8)
    out_bf16 = jax.block_until_ready(out_bf16)
    assert jnp.allclose(out_bf16, ref, atol=5e-2, rtol=0.0), "bf16 kernel mismatch vs reference"

    print("KERNEL_OK")
</pallas_src>

<mosaic_0001>
module attributes {stable_mosaic.version = 11 : i64} {
  func.func @pointer_scores_kernel(%arg0: i32, %arg1: i32, %arg2: memref<1x1x32x16xf32, #tpu.memory_space<vmem>>, %arg3: memref<1x32x128xf32, #tpu.memory_space<vmem>>, %arg4: memref<1x16x128xf32, #tpu.memory_space<vmem>>, %arg5: memref<1x32xf32, #tpu.memory_space<vmem>>, %arg6: memref<1x16x128xf32, #tpu.memory_space<vmem>>, %arg7: memref<16x128xf32, #tpu.memory_space<vmem>>) attributes {dimension_semantics = [#tpu.dimension_semantics<parallel>, #tpu.dimension_semantics<parallel>], iteration_bounds = array<i64: 2, 1>, scalar_prefetch = 0 : i64, scratch_operands = 1 : i64, tpu.core_type = #tpu.core_type<tc>, window_params = [{transform_indices = @transform_0, window_bounds = array<i64: 1, 1, 32, 16>}, {transform_indices = @transform_1, window_bounds = array<i64: 1, 32, 128>}, {transform_indices = @transform_2, window_bounds = array<i64: 1, 16, 128>}, {pipeline_mode = #tpu.pipeline_mode<synchronous>, transform_indices = @transform_3, window_bounds = array<i64: 1, 32>}, {transform_indices = @transform_4, window_bounds = array<i64: 1, 16, 128>}]} {
    %c0 = arith.constant 0 : index
    %c0_0 = arith.constant 0 : index
    %c0_1 = arith.constant 0 : index
    %0 = vector.load %arg3[%c0, %c0_0, %c0_1] : memref<1x32x128xf32, #tpu.memory_space<vmem>>, vector<1x32x128xf32>
    %1 = vector.shape_cast %0 : vector<1x32x128xf32> to vector<32x128xf32>
    %c0_2 = arith.constant 0 : index
    %c0_3 = arith.constant 0 : index
    %c0_4 = arith.constant 0 : index
    %c0_5 = arith.constant 0 : index
    %2 = vector.load %arg2[%c0_2, %c0_3, %c0_4, %c0_5] : memref<1x1x32x16xf32, #tpu.memory_space<vmem>>, vector<1x1x32x16xf32>
    %3 = vector.shape_cast %2 : vector<1x1x32x16xf32> to vector<32x16xf32>
    %c0_6 = arith.constant 0 : index
    %c0_7 = arith.constant 0 : index
    %4 = vector.load %arg5[%c0_6, %c0_7] : memref<1x32xf32, #tpu.memory_space<vmem>>, vector<1x32xf32>
    %5 = vector.extract_strided_slice %3 {offsets = [0, 0], sizes = [32, 1], strides = [1, 1]} : vector<32x16xf32> to vector<32x1xf32>
    %6 = vector.broadcast %5 : vector<32x1xf32> to vector<32x128xf32>
    %7 = arith.addf %1, %6 : vector<32x128xf32>
    %8 = math.tanh %7 : vector<32x128xf32>
    %cst = arith.constant dense<0.000000e+00> : vector<1x128xf32>
    %9 = tpu.matmul %4, %8, %cst {dimension_numbers = #tpu.dot_dimension_numbers<[1], [0], [0], [1], [0, 0, 1, 1], [], []>} : vector<1x32xf32>, vector<32x128xf32>, vector<1x128xf32> -> vector<1x128xf32>
    %c0_8 = arith.constant 0 : index
    %c0_9 = arith.constant 0 : index
    %10 = vector.load %arg7[%c0_8, %c0_9] : memref<16x128xf32, #tpu.memory_space<vmem>>, vector<1x128xf32>
    tpu.vector_store %arg7[%c0_8, %c0_9], %9 {strides = array<i32>} : memref<16x128xf32, #tpu.memory_space<vmem>>, vector<1x128xf32>,
    %11 = vector.extract_strided_slice %3 {offsets = [0, 1], sizes = [32, 1], strides = [1, 1]} : vector<32x16xf32> to vector<32x1xf32>
    %12 = vector.broadcast %11 : vector<32x1xf32> to vector<32x128xf32>
    %13 = arith.addf %1, %12 : vector<32x128xf32>
    %14 = math.tanh %13 : vector<32x128xf32>
    %cst_10 = arith.constant dense<0.000000e+00> : vector<1x128xf32>
    %15 = tpu.matmul %4, %14, %cst_10 {dimension_numbers = #tpu.dot_dimension_numbers<[1], [0], [0], [1], [0, 0, 1, 1], [], []>} : vector<1x32xf32>, vector<32x128xf32>, vector<1x128xf32> -> vector<1x128xf32>
    %c1 = arith.constant 1 : index
    %c0_11 = arith.constant 0 : index
    %16 = vector.load %arg7[%c1, %c0_11] : memref<16x128xf32, #tpu.memory_space<vmem>>, vector<1x128xf32>
    tpu.vector_store %arg7[%c1, %c0_11], %15 {strides = array<i32>} : memref<16x128xf32, #tpu.memory_space<vmem>>, vector<1x128xf32>,
    %17 = vector.extract_strided_slice %3 {offsets = [0, 2], sizes = [32, 1], strides = [1, 1]} : vector<32x16xf32> to vector<32x1xf32>
    %18 = vector.broadcast %17 : vector<32x1xf32> to vector<32x128xf32>
    %19 = arith.addf %1, %18 : vector<32x128xf32>
    %20 = math.tanh %19 : vector<32x128xf32>
    %cst_12 = arith.constant dense<0.000000e+00> : vector<1x128xf32>
    %21 = tpu.matmul %4, %20, %cst_12 {dimension_numbers = #tpu.dot_dimension_numbers<[1], [0], [0], [1], [0, 0, 1, 1], [], []>} : vector<1x32xf32>, vector<32x128xf32>, vector<1x128xf32> -> vector<1x128xf32>
    %c2 = arith.constant 2 : index
    %c0_13 = arith.constant 0 : index
    %22 = vector.load %arg7[%c2, %c0_13] : memref<16x128xf32, #tpu.memory_space<vmem>>, vector<1x128xf32>
    tpu.vector_store %arg7[%c2, %c0_13], %21 {strides = array<i32>} : memref<16x128xf32, #tpu.memory_space<vmem>>, vector<1x128xf32>,
    %23 = vector.extract_strided_slice %3 {offsets = [0, 3], sizes = [32, 1], strides = [1, 1]} : vector<32x16xf32> to vector<32x1xf32>
    %24 = vector.broadcast %23 : vector<32x1xf32> to vector<32x128xf32>
    %25 = arith.addf %1, %24 : vector<32x128xf32>
    %26 = math.tanh %25 : vector<32x128xf32>
    %cst_14 = arith.constant dense<0.000000e+00> : vector<1x128xf32>
    %27 = tpu.matmul %4, %26, %cst_14 {dimension_numbers = #tpu.dot_dimension_numbers<[1], [0], [0], [1], [0, 0, 1, 1], [], []>} : vector<1x32xf32>, vector<32x128xf32>, vector<1x128xf32> -> vector<1x128xf32>
    %c3 = arith.constant 3 : index
    %c0_15 = arith.constant 0 : index
    %28 = vector.load %arg7[%c3, %c0_15] : memref<16x128xf32, #tpu.memory_space<vmem>>, vector<1x128xf32>
    tpu.vector_store %arg7[%c3, %c0_15], %27 {strides = array<i32>} : memref<16x128xf32, #tpu.memory_space<vmem>>, vector<1x128xf32>,
    %29 = vector.extract_strided_slice %3 {offsets = [0, 4], sizes = [32, 1], strides = [1, 1]} : vector<32x16xf32> to vector<32x1xf32>
    %30 = vector.broadcast %29 : vector<32x1xf32> to vector<32x128xf32>
    %31 = arith.addf %1, %30 : vector<32x128xf32>
    %32 = math.tanh %31 : vector<32x128xf32>
    %cst_16 = arith.constant dense<0.000000e+00> : vector<1x128xf32>
    %33 = tpu.matmul %4, %32, %cst_16 {dimension_numbers = #tpu.dot_dimension_numbers<[1], [0], [0], [1], [0, 0, 1, 1], [], []>} : vector<1x32xf32>, vector<32x128xf32>, vector<1x128xf32> -> vector<1x128xf32>
    %c4 = arith.constant 4 : index
    %c0_17 = arith.constant 0 : index
    %34 = vector.load %arg7[%c4, %c0_17] : memref<16x128xf32, #tpu.memory_space<vmem>>, vector<1x128xf32>
    tpu.vector_store %arg7[%c4, %c0_17], %33 {strides = array<i32>} : memref<16x128xf32, #tpu.memory_space<vmem>>, vector<1x128xf32>,
    %35 = vector.extract_strided_slice %3 {offsets = [0, 5], sizes = [32, 1], strides = [1, 1]} : vector<32x16xf32> to vector<32x1xf32>
    %36 = vector.broadcast %35 : vector<32x1xf32> to vector<32x128xf32>
    %37 = arith.addf %1, %36 : vector<32x128xf32>
    %38 = math.tanh %37 : vector<32x128xf32>
    %cst_18 = arith.constant dense<0.000000e+00> : vector<1x128xf32>
    %39 = tpu.matmul %4, %38, %cst_18 {dimension_numbers = #tpu.dot_dimension_numbers<[1], [0], [0], [1], [0, 0, 1, 1], [], []>} : vector<1x32xf32>, vector<32x128xf32>, vector<1x128xf32> -> vector<1x128xf32>
    %c5 = arith.constant 5 : index
    %c0_19 = arith.constant 0 : index
    %40 = vector.load %arg7[%c5, %c0_19] : memref<16x128xf32, #tpu.memory_space<vmem>>, vector<1x128xf32>
    tpu.vector_store %arg7[%c5, %c0_19], %39 {strides = array<i32>} : memref<16x128xf32, #tpu.memory_space<vmem>>, vector<1x128xf32>,
    %41 = vector.extract_strided_slice %3 {offsets = [0, 6], sizes = [32, 1], strides = [1, 1]} : vector<32x16xf32> to vector<32x1xf32>
    %42 = vector.broadcast %41 : vector<32x1xf32> to vector<32x128xf32>
    %43 = arith.addf %1, %42 : vector<32x128xf32>
    %44 = math.tanh %43 : vector<32x128xf32>
    %cst_20 = arith.constant dense<0.000000e+00> : vector<1x128xf32>
    %45 = tpu.matmul %4, %44, %cst_20 {dimension_numbers = #tpu.dot_dimension_numbers<[1], [0], [0], [1], [0, 0, 1, 1], [], []>} : vector<1x32xf32>, vector<32x128xf32>, vector<1x128xf32> -> vector<1x128xf32>
    %c6 = arith.constant 6 : index
    %c0_21 = arith.constant 0 : index
    %46 = vector.load %arg7[%c6, %c0_21] : memref<16x128xf32, #tpu.memory_space<vmem>>, vector<1x128xf32>
    tpu.vector_store %arg7[%c6, %c0_21], %45 {strides = array<i32>} : memref<16x128xf32, #tpu.memory_space<vmem>>, vector<1x128xf32>,
    %47 = vector.extract_strided_slice %3 {offsets = [0, 7], sizes = [32, 1], strides = [1, 1]} : vector<32x16xf32> to vector<32x1xf32>
    %48 = vector.broadcast %47 : vector<32x1xf32> to vector<32x128xf32>
    %49 = arith.addf %1, %48 : vector<32x128xf32>
    %50 = math.tanh %49 : vector<32x128xf32>
    %cst_22 = arith.constant dense<0.000000e+00> : vector<1x128xf32>
    %51 = tpu.matmul %4, %50, %cst_22 {dimension_numbers = #tpu.dot_dimension_numbers<[1], [0], [0], [1], [0, 0, 1, 1], [], []>} : vector<1x32xf32>, vector<32x128xf32>, vector<1x128xf32> -> vector<1x128xf32>
    %c7 = arith.constant 7 : index
    %c0_23 = arith.constant 0 : index
    %52 = vector.load %arg7[%c7, %c0_23] : memref<16x128xf32, #tpu.memory_space<vmem>>, vector<1x128xf32>
    tpu.vector_store %arg7[%c7, %c0_23], %51 {strides = array<i32>} : memref<16x128xf32, #tpu.memory_space<vmem>>, vector<1x128xf32>,
    %53 = vector.extract_strided_slice %3 {offsets = [0, 8], sizes = [32, 1], strides = [1, 1]} : vector<32x16xf32> to vector<32x1xf32>
    %54 = vector.broadcast %53 : vector<32x1xf32> to vector<32x128xf32>
    %55 = arith.addf %1, %54 : vector<32x128xf32>
    %56 = math.tanh %55 : vector<32x128xf32>
    %cst_24 = arith.constant dense<0.000000e+00> : vector<1x128xf32>
    %57 = tpu.matmul %4, %56, %cst_24 {dimension_numbers = #tpu.dot_dimension_numbers<[1], [0], [0], [1], [0, 0, 1, 1], [], []>} : vector<1x32xf32>, vector<32x128xf32>, vector<1x128xf32> -> vector<1x128xf32>
    %c8 = arith.constant 8 : index
    %c0_25 = arith.constant 0 : index
    %58 = vector.load %arg7[%c8, %c0_25] : memref<16x128xf32, #tpu.memory_space<vmem>>, vector<1x128xf32>
    tpu.vector_store %arg7[%c8, %c0_25], %57 {strides = array<i32>} : memref<16x128xf32, #tpu.memory_space<vmem>>, vector<1x128xf32>,
    %59 = vector.extract_strided_slice %3 {offsets = [0, 9], sizes = [32, 1], strides = [1, 1]} : vector<32x16xf32> to vector<32x1xf32>
    %60 = vector.broadcast %59 : vector<32x1xf32> to vector<32x128xf32>
    %61 = arith.addf %1, %60 : vector<32x128xf32>
    %62 = math.tanh %61 : vector<32x128xf32>
    %cst_26 = arith.constant dense<0.000000e+00> : vector<1x128xf32>
    %63 = tpu.matmul %4, %62, %cst_26 {dimension_numbers = #tpu.dot_dimension_numbers<[1], [0], [0], [1], [0, 0, 1, 1], [], []>} : vector<1x32xf32>, vector<32x128xf32>, vector<1x128xf32> -> vector<1x128xf32>
    %c9 = arith.constant 9 : index
    %c0_27 = arith.constant 0 : index
    %64 = vector.load %arg7[%c9, %c0_27] : memref<16x128xf32, #tpu.memory_space<vmem>>, vector<1x128xf32>
    tpu.vector_store %arg7[%c9, %c0_27], %63 {strides = array<i32>} : memref<16x128xf32, #tpu.memory_space<vmem>>, vector<1x128xf32>,
    %65 = vector.extract_strided_slice %3 {offsets = [0, 10], sizes = [32, 1], strides = [1, 1]} : vector<32x16xf32> to vector<32x1xf32>
    %66 = vector.broadcast %65 : vector<32x1xf32> to vector<32x128xf32>
    %67 = arith.addf %1, %66 : vector<32x128xf32>
    %68 = math.tanh %67 : vector<32x128xf32>
    %cst_28 = arith.constant dense<0.000000e+00> : vector<1x128xf32>
    %69 = tpu.matmul %4, %68, %cst_28 {dimension_numbers = #tpu.dot_dimension_numbers<[1], [0], [0], [1], [0, 0, 1, 1], [], []>} : vector<1x32xf32>, vector<32x128xf32>, vector<1x128xf32> -> vector<1x128xf32>
    %c10 = arith.constant 10 : index
    %c0_29 = arith.constant 0 : index
    %70 = vector.load %arg7[%c10, %c0_29] : memref<16x128xf32, #tpu.memory_space<vmem>>, vector<1x128xf32>
    tpu.vector_store %arg7[%c10, %c0_29], %69 {strides = array<i32>} : memref<16x128xf32, #tpu.memory_space<vmem>>, vector<1x128xf32>,
    %71 = vector.extract_strided_slice %3 {offsets = [0, 11], sizes = [32, 1], strides = [1, 1]} : vector<32x16xf32> to vector<32x1xf32>
    %72 = vector.broadcast %71 : vector<32x1xf32> to vector<32x128xf32>
    %73 = arith.addf %1, %72 : vector<32x128xf32>
    %74 = math.tanh %73 : vector<32x128xf32>
    %cst_30 = arith.constant dense<0.000000e+00> : vector<1x128xf32>
    %75 = tpu.matmul %4, %74, %cst_30 {dimension_numbers = #tpu.dot_dimension_numbers<[1], [0], [0], [1], [0, 0, 1, 1], [], []>} : vector<1x32xf32>, vector<32x128xf32>, vector<1x128xf32> -> vector<1x128xf32>
    %c11 = arith.constant 11 : index
    %c0_31 = arith.constant 0 : index
    %76 = vector.load %arg7[%c11, %c0_31] : memref<16x128xf32, #tpu.memory_space<vmem>>, vector<1x128xf32>
    tpu.vector_store %arg7[%c11, %c0_31], %75 {strides = array<i32>} : memref<16x128xf32, #tpu.memory_space<vmem>>, vector<1x128xf32>,
    %77 = vector.extract_strided_slice %3 {offsets = [0, 12], sizes = [32, 1], strides = [1, 1]} : vector<32x16xf32> to vector<32x1xf32>
    %78 = vector.broadcast %77 : vector<32x1xf32> to vector<32x128xf32>
    %79 = arith.addf %1, %78 : vector<32x128xf32>
    %80 = math.tanh %79 : vector<32x128xf32>
    %cst_32 = arith.constant dense<0.000000e+00> : vector<1x128xf32>
    %81 = tpu.matmul %4, %80, %cst_32 {dimension_numbers = #tpu.dot_dimension_numbers<[1], [0], [0], [1], [0, 0, 1, 1], [], []>} : vector<1x32xf32>, vector<32x128xf32>, vector<1x128xf32> -> vector<1x128xf32>
    %c12 = arith.constant 12 : index
    %c0_33 = arith.constant 0 : index
    %82 = vector.load %arg7[%c12, %c0_33] : memref<16x128xf32, #tpu.memory_space<vmem>>, vector<1x128xf32>
    tpu.vector_store %arg7[%c12, %c0_33], %81 {strides = array<i32>} : memref<16x128xf32, #tpu.memory_space<vmem>>, vector<1x128xf32>,
    %83 = vector.extract_strided_slice %3 {offsets = [0, 13], sizes = [32, 1], strides = [1, 1]} : vector<32x16xf32> to vector<32x1xf32>
    %84 = vector.broadcast %83 : vector<32x1xf32> to vector<32x128xf32>
    %85 = arith.addf %1, %84 : vector<32x128xf32>
    %86 = math.tanh %85 : vector<32x128xf32>
    %cst_34 = arith.constant dense<0.000000e+00> : vector<1x128xf32>
    %87 = tpu.matmul %4, %86, %cst_34 {dimension_numbers = #tpu.dot_dimension_numbers<[1], [0], [0], [1], [0, 0, 1, 1], [], []>} : vector<1x32xf32>, vector<32x128xf32>, vector<1x128xf32> -> vector<1x128xf32>
    %c13 = arith.constant 13 : index
    %c0_35 = arith.constant 0 : index
    %88 = vector.load %arg7[%c13, %c0_35] : memref<16x128xf32, #tpu.memory_space<vmem>>, vector<1x128xf32>
    tpu.vector_store %arg7[%c13, %c0_35], %87 {strides = array<i32>} : memref<16x128xf32, #tpu.memory_space<vmem>>, vector<1x128xf32>,
    %89 = vector.extract_strided_slice %3 {offsets = [0, 14], sizes = [32, 1], strides = [1, 1]} : vector<32x16xf32> to vector<32x1xf32>
    %90 = vector.broadcast %89 : vector<32x1xf32> to vector<32x128xf32>
    %91 = arith.addf %1, %90 : vector<32x128xf32>
    %92 = math.tanh %91 : vector<32x128xf32>
    %cst_36 = arith.constant dense<0.000000e+00> : vector<1x128xf32>
    %93 = tpu.matmul %4, %92, %cst_36 {dimension_numbers = #tpu.dot_dimension_numbers<[1], [0], [0], [1], [0, 0, 1, 1], [], []>} : vector<1x32xf32>, vector<32x128xf32>, vector<1x128xf32> -> vector<1x128xf32>
    %c14 = arith.constant 14 : index
    %c0_37 = arith.constant 0 : index
    %94 = vector.load %arg7[%c14, %c0_37] : memref<16x128xf32, #tpu.memory_space<vmem>>, vector<1x128xf32>
    tpu.vector_store %arg7[%c14, %c0_37], %93 {strides = array<i32>} : memref<16x128xf32, #tpu.memory_space<vmem>>, vector<1x128xf32>,
    %95 = vector.extract_strided_slice %3 {offsets = [0, 15], sizes = [32, 1], strides = [1, 1]} : vector<32x16xf32> to vector<32x1xf32>
    %96 = vector.broadcast %95 : vector<32x1xf32> to vector<32x128xf32>
    %97 = arith.addf %1, %96 : vector<32x128xf32>
    %98 = math.tanh %97 : vector<32x128xf32>
    %cst_38 = arith.constant dense<0.000000e+00> : vector<1x128xf32>
    %99 = tpu.matmul %4, %98, %cst_38 {dimension_numbers = #tpu.dot_dimension_numbers<[1], [0], [0], [1], [0, 0, 1, 1], [], []>} : vector<1x32xf32>, vector<32x128xf32>, vector<1x128xf32> -> vector<1x128xf32>
    %c15 = arith.constant 15 : index
    %c0_39 = arith.constant 0 : index
    %100 = vector.load %arg7[%c15, %c0_39] : memref<16x128xf32, #tpu.memory_space<vmem>>, vector<1x128xf32>
    tpu.vector_store %arg7[%c15, %c0_39], %99 {strides = array<i32>} : memref<16x128xf32, #tpu.memory_space<vmem>>, vector<1x128xf32>,
    %101 = tpu.iota {dimensions = array<i32: 1>} : vector<16x128xi32>
    %c20_i32 = arith.constant 20 : i32
    %102 = vector.broadcast %c20_i32 : i32 to vector<16x128xi32>
    %103 = arith.cmpi slt, %101, %102 : vector<16x128xi32>
    %c0_40 = arith.constant 0 : index
    %c0_41 = arith.constant 0 : index
    %c0_42 = arith.constant 0 : index
    %104 = vector.load %arg4[%c0_40, %c0_41, %c0_42] : memref<1x16x128xf32, #tpu.memory_space<vmem>>, vector<1x16x128xf32>
    %105 = vector.shape_cast %104 : vector<1x16x128xf32> to vector<16x128xf32>
    %cst_43 = arith.constant 1.000000e-16 : f32
    %106 = vector.broadcast %cst_43 : f32 to vector<16x128xf32>
    %107 = arith.addf %105, %106 : vector<16x128xf32>
    %108 = math.log %107 : vector<16x128xf32>
    %cst_44 = arith.constant -1.000000e+30 : f32
    %109 = vector.broadcast %cst_44 : f32 to vector<16x128xf32>
    %110 = arith.select %103, %108, %109 : vector<16x128xi1>, vector<16x128xf32>
    %c0_45 = arith.constant 0 : index
    %c0_46 = arith.constant 0 : index
    %111 = vector.load %arg7[%c0_45, %c0_46] : memref<16x128xf32, #tpu.memory_space<vmem>>, vector<16x128xf32>
    %112 = arith.addf %111, %110 : vector<16x128xf32>
    %cst_47 = arith.constant dense<0xFF800000> : vector<16xf32>
    %113 = vector.multi_reduction <maximumf>, %112, %cst_47 [1] : vector<16x128xf32> to vector<16xf32>
    %114 = vector.shape_cast %113 : vector<16xf32> to vector<16x1xf32>
    %115 = vector.broadcast %114 : vector<16x1xf32> to vector<16x128xf32>
    %116 = arith.subf %112, %115 : vector<16x128xf32>
    %117 = math.exp %116 : vector<16x128xf32>
    %cst_48 = arith.constant dense<0.000000e+00> : vector<16xf32>
    %118 = vector.multi_reduction <add>, %117, %cst_48 [1] : vector<16x128xf32> to vector<16xf32>
    %119 = vector.shape_cast %118 : vector<16xf32> to vector<16x1xf32>
    %120 = math.log %119 : vector<16x1xf32>
    %121 = arith.addf %120, %114 : vector<16x1xf32>
    %122 = vector.broadcast %121 : vector<16x1xf32> to vector<16x128xf32>
    %123 = arith.subf %112, %122 : vector<16x128xf32>
    %c0_49 = arith.constant 0 : index
    %c0_50 = arith.constant 0 : index
    %c0_51 = arith.constant 0 : index
    %124 = vector.load %arg6[%c0_49, %c0_50, %c0_51] : memref<1x16x128xf32, #tpu.memory_space<vmem>>, vector<1x16x128xf32>
    %125 = vector.shape_cast %124 : vector<1x16x128xf32> to vector<16x128xf32>
    %126 = vector.shape_cast %123 : vector<16x128xf32> to vector<1x16x128xf32>
    tpu.vector_store %arg6[%c0_49, %c0_50, %c0_51], %126 {strides = array<i32>} : memref<1x16x128xf32, #tpu.memory_space<vmem>>, vector<1x16x128xf32>,
    return
  }
  func.func @transform_0(%arg0: i32, %arg1: i32) -> (i32, i32, i32, i32) {
    %c0_i32 = arith.constant 0 : i32
    %c0_i32_0 = arith.constant 0 : i32
    %c0_i32_1 = arith.constant 0 : i32
    return %arg0, %arg1, %c0_i32, %c0_i32_0 : i32, i32, i32, i32
  }
  func.func @transform_1(%arg0: i32, %arg1: i32) -> (i32, i32, i32) {
    %c0_i32 = arith.constant 0 : i32
    %c0_i32_0 = arith.constant 0 : i32
    %c0_i32_1 = arith.constant 0 : i32
    return %arg0, %c0_i32, %c0_i32_0 : i32, i32, i32
  }
  func.func @transform_2(%arg0: i32, %arg1: i32) -> (i32, i32, i32) {
    %c0_i32 = arith.constant 0 : i32
    %c0_i32_0 = arith.constant 0 : i32
    return %arg0, %arg1, %c0_i32 : i32, i32, i32
  }
  func.func @transform_3(%arg0: i32, %arg1: i32) -> (i32, i32) {
    %c0_i32 = arith.constant 0 : i32
    %c0_i32_0 = arith.constant 0 : i32
    %c0_i32_1 = arith.constant 0 : i32
    return %c0_i32, %c0_i32_0 : i32, i32
  }
  func.func @transform_4(%arg0: i32, %arg1: i32) -> (i32, i32, i32) {
    %c0_i32 = arith.constant 0 : i32
    %c0_i32_0 = arith.constant 0 : i32
    return %arg0, %arg1, %c0_i32 : i32, i32, i32
  }
}

</mosaic_0001>

<llo_original>
// kernel: tpu_custom_call.1
$region0: #{tpu_custom_call.1}
  #allocation0 [shape = 'u32[]', space=smem, size = 0x4, offset = 0x4, fixed_abs, tag = 'smem constant byte address 0x4 - core index']
  #allocation1 [shape = 'u32[72,128]{1,0:T(1,128)}', space=vmem, size = 0x9000, scoped, tag = 'internal scratch']
  #allocation2 [shape = 'f32[16,128]{1,0:T(8,128)}', space=vmem, size = 0x2000, scoped, tag = 'scratch operand']
  %s0 = inlined_call_operand.vmem [shape: f32[2,1,32,16], index: 0, kind: input, shape index: {}]
  %s1 = inlined_call_operand.vmem [shape: f32[2,32,128], index: 1, kind: input, shape index: {}]
  %s2 = inlined_call_operand.vmem [shape: f32[2,16,128], index: 2, kind: input, shape index: {}]
  %s3 = inlined_call_operand.vmem [shape: f32[1,32], index: 3, kind: input, shape index: {}]
  %s4 = inlined_call_operand.hbm [shape: f32[2,16,128], index: 4, kind: output, shape index: {}]
  %s5 = sld [smem:[#allocation0]]
  $region49: #{tpu_custom_call.1} parent=0
    _
  %s7 = ssub.s32 1, %s5
  %s8 = scalar_select 0, %s7, %s5
  $region1: #{tpu_custom_call.1} parent=0
    #allocation3 [shape = 'u8[16384]{0}', space=vmem, size = 0x4000, scoped, tag = 'output window, operand 0']
    #allocation4 [shape = 's32[2]{0}', space=sflag, size = 0x8, scoped, tag = 'scoped memory for tpu_custom_call.1']
    %9 = vsyncpa [#allocation4], 0
    %s10 = scalar_lea.sflag [#allocation4], 1
    %11 = vsyncpa %s10, 0
    loop: start=0, step=1, limit=4
    $region2: #{tpu_custom_call.1} parent=1 // loop_pre_header
      _
    $region3: #{tpu_custom_call.1} parent=1 // loop_header
      %s13 = sphi 0, %s17
      %p14 = scmp.ge.s32.totalorder %s13, 4
      %s20 = sphi 0, %s32
      %s21 = sphi 0, %s28
      %s22 = sphi 0, %s20
      %s23 = sphi 0, %s21
      %s24 = sphi 0, %s22
      %s25 = sphi 0, %s23
      %s37 = sphi 0, %s39
      %s40 = sphi 0, %s37
      %s41 = sphi 0, %s40
      %s57 = sphi 0, %s41
      %s63 = sphi 0, %s65
      %s66 = sphi 0, %s63
      %s67 = sphi 0, %s66
      %s83 = sphi 0, %s67
      %s91 = sphi 0, %s93
      %s94 = sphi 0, %s91
      %s95 = sphi 0, %s94
      %s111 = sphi 0, %s95
      %s115 = sphi 0, %s115
      %s117 = sphi 0, %s115
      %s118 = sphi 0, %s117
      %s132 = sphi 0, %s118
      %s140 = sphi 0, %s142
      %s143 = sphi 0, %s140
      %s144 = sphi 0, %s143
      %s160 = sphi 0, %s144
    $region4: #{tpu_custom_call.1} parent=1 // loop_header_branch
      %16 = sbr.rel (%p14) target = $region8
    $region5: #{tpu_custom_call.1} parent=1 // loop_body
      %s18 = ssub.s32 %s13, 1
      %s19 = ssub.s32 %s13, 2
      %s26 = sadd.s32 1, %s21
      %p27 = scmp.ge.s32.totalorder %s26, 1
      %s28 = scalar_select %p27, 0, %s26
      %s29 = sadd.s32 1, %s20
      %s30 = scalar_select %p27, %s29, %s20
      %p31 = scmp.ge.s32.totalorder %s30, 2
      %s32 = scalar_select %p31, 0, %s30
      %s33 = ssub.s32 %s20, %s32
      %s34 = ssub.s32 %s21, %s28
      %s35 = sor.u32 %s33, %s34
      %p36 = scmp.eq.s32.totalorder %s35, 0
      %s38 = sadd.s32 %s37, 1
      %s39 = scalar_select %p36, %s37, %s38
      %p42 = pneg %p36
      %p43 = scmp.eq.s32.totalorder %s13, 1
      %p44 = por %p42, %p43
      %p45 = scmp.ne.s32.totalorder %s37, %s40
      %p46 = scmp.eq.s32.totalorder %s13, 0
      %p47 = por %p45, %p46
      %p48 = scmp.ne.s32.totalorder %s37, %s40
      %p49 = scmp.eq.s32.totalorder %s18, 1
      %p50 = por %p48, %p49
      %p51 = scmp.ne.s32.totalorder %s40, %s41
      %p52 = scmp.eq.s32.totalorder %s18, 0
      %p53 = por %p51, %p52
      %p54 = scmp.ne.s32.totalorder %s40, %s41
      %p55 = scmp.eq.s32.totalorder %s19, 1
      %p56 = por %p54, %p55
      %p58 = scmp.ne.s32.totalorder %s41, %s57
      %p59 = scmp.eq.s32.totalorder %s19, 0
      %p60 = por %p58, %p59
      %s61 = ssub.s32 %s20, %s32
      %p62 = scmp.eq.s32.totalorder %s61, 0
      %s64 = sadd.s32 %s63, 1
      %s65 = scalar_select %p62, %s63, %s64
      %p68 = pneg %p62
      %p69 = scmp.eq.s32.totalorder %s13, 1
      %p70 = por %p68, %p69
      %p71 = scmp.ne.s32.totalorder %s63, %s66
      %p72 = scmp.eq.s32.totalorder %s13, 0
      %p73 = por %p71, %p72
      %p74 = scmp.ne.s32.totalorder %s63, %s66
      %p75 = scmp.eq.s32.totalorder %s18, 1
      %p76 = por %p74, %p75
      %p77 = scmp.ne.s32.totalorder %s66, %s67
      %p78 = scmp.eq.s32.totalorder %s18, 0
      %p79 = por %p77, %p78
      %p80 = scmp.ne.s32.totalorder %s66, %s67
      %p81 = scmp.eq.s32.totalorder %s19, 1
      %p82 = por %p80, %p81
      %p84 = scmp.ne.s32.totalorder %s67, %s83
      %p85 = scmp.eq.s32.totalorder %s19, 0
      %p86 = por %p84, %p85
      %s87 = ssub.s32 %s20, %s32
      %s88 = ssub.s32 %s21, %s28
      %s89 = sor.u32 %s87, %s88
      %p90 = scmp.eq.s32.totalorder %s89, 0
      %s92 = sadd.s32 %s91, 1
      %s93 = scalar_select %p90, %s91, %s92
      %p96 = pneg %p90
      %p97 = scmp.eq.s32.totalorder %s13, 1
      %p98 = por %p96, %p97
      %p99 = scmp.ne.s32.totalorder %s91, %s94
      %p100 = scmp.eq.s32.totalorder %s13, 0
      %p101 = por %p99, %p100
      %p102 = scmp.ne.s32.totalorder %s91, %s94
      %p103 = scmp.eq.s32.totalorder %s18, 1
      %p104 = por %p102, %p103
      %p105 = scmp.ne.s32.totalorder %s94, %s95
      %p106 = scmp.eq.s32.totalorder %s18, 0
      %p107 = por %p105, %p106
      %p108 = scmp.ne.s32.totalorder %s94, %s95
      %p109 = scmp.eq.s32.totalorder %s19, 1
      %p110 = por %p108, %p109
      %p112 = scmp.ne.s32.totalorder %s95, %s111
      %p113 = scmp.eq.s32.totalorder %s19, 0
      %p114 = por %p112, %p113
      %s116 = sadd.s32 %s115, 1
      %p119 = scmp.eq.s32.totalorder %s13, 1
      %p120 = scmp.ne.s32.totalorder %s115, %s117
      %p121 = scmp.eq.s32.totalorder %s13, 0
      %p122 = por %p120, %p121
      %p123 = scmp.ne.s32.totalorder %s115, %s117
      %p124 = scmp.eq.s32.totalorder %s18, 1
      %p125 = por %p123, %p124
      %p126 = scmp.ne.s32.totalorder %s117, %s118
      %p127 = scmp.eq.s32.totalorder %s18, 0
      %p128 = por %p126, %p127
      %p129 = scmp.ne.s32.totalorder %s117, %s118
      %p130 = scmp.eq.s32.totalorder %s19, 1
      %p131 = por %p129, %p130
      %p133 = scmp.ne.s32.totalorder %s118, %s132
      %p134 = scmp.eq.s32.totalorder %s19, 0
      %p135 = por %p133, %p134
      %s136 = ssub.s32 %s20, %s32
      %s137 = ssub.s32 %s21, %s28
      %s138 = sor.u32 %s136, %s137
      %p139 = scmp.eq.s32.totalorder %s138, 0
      %s141 = sadd.s32 %s140, 1
      %s142 = scalar_select %p139, %s140, %s141
      %p145 = pneg %p139
      %p146 = scmp.eq.s32.totalorder %s13, 1
      %p147 = por %p145, %p146
      %p148 = scmp.ne.s32.totalorder %s140, %s143
      %p149 = scmp.eq.s32.totalorder %s13, 0
      %p150 = por %p148, %p149
      %p151 = scmp.ne.s32.totalorder %s140, %s143
      %p152 = scmp.eq.s32.totalorder %s18, 1
      %p153 = por %p151, %p152
      %p154 = scmp.ne.s32.totalorder %s143, %s144
      %p155 = scmp.eq.s32.totalorder %s18, 0
      %p156 = por %p154, %p155
      %p157 = scmp.ne.s32.totalorder %s143, %s144
      %p158 = scmp.eq.s32.totalorder %s19, 1
      %p159 = por %p157, %p158
      %p161 = scmp.ne.s32.totalorder %s144, %s160
      %p162 = scmp.eq.s32.totalorder %s19, 0
      %p163 = por %p161, %p162
      %p164 = scmp.le.s32.totalorder 1, %s13
      %p165 = scmp.lt.s32.totalorder %s13, 3
      %p166 = pnand %p164, %p165
      %p167 = pneg %p166
      // Predicated region
      $region9: #{tpu_custom_call.1} parent=5 // pred_check
        _
      $region10: #{tpu_custom_call.1} parent=5 // pred_check_branch
        %169 = sbr.rel (%p166) target = $region12
      $region11: #{tpu_custom_call.1} parent=5 // pred_region
        %s170 = ssub.s32 %s13, 1
        // Predicated region
        $region13: #{tpu_custom_call.1} parent=11 // pred_check
          %p171 = pneg %p128
        $region14: #{tpu_custom_call.1} parent=11 // pred_check_branch
          %173 = sbr.rel (%p171) target = $region16
        $region15: #{tpu_custom_call.1} parent=11 // pred_region
          _
        $region16: #{tpu_custom_call.1} parent=11 // pred_fallthru
          _
      $region12: #{tpu_custom_call.1} parent=5 // pred_fallthru
        _
      %p174 = scmp.lt.s32.totalorder %s13, 2
      // Predicated region
      $region17: #{tpu_custom_call.1} parent=5 // pred_check
        %p175 = pneg %p174
      $region18: #{tpu_custom_call.1} parent=5 // pred_check_branch
        %177 = sbr.rel (%p175) target = $region20
      $region19: #{tpu_custom_call.1} parent=5 // pred_region
        // Predicated region
        $region21: #{tpu_custom_call.1} parent=19 // pred_check
          %p178 = pneg %p47
        $region22: #{tpu_custom_call.1} parent=19 // pred_check_branch
          %180 = sbr.rel (%p178) target = $region24
        $region23: #{tpu_custom_call.1} parent=19 // pred_region
          %p181 = scmp.lt.s32.totalorder %s20, 1
          %s182 = scalar_select %p181, %s20, 1
          %p183 = scmp.lt.s32.totalorder %s21, 0
          %s184 = scalar_select %p183, %s21, 0
          %s185 = smul.addr %s184, 4
          %s186 = smul.addr %s182, 4
          %s187 = sadd.s32 %s185, %s186
          %s188 = smul.addr %s187, 8
          %s189 = scalar_lea.vmem %s0, %s188
        $region24: #{tpu_custom_call.1} parent=19 // pred_fallthru
          _
        // Predicated region
        $region25: #{tpu_custom_call.1} parent=19 // pred_check
          %p190 = pneg %p73
        $region26: #{tpu_custom_call.1} parent=19 // pred_check_branch
          %192 = sbr.rel (%p190) target = $region28
        $region27: #{tpu_custom_call.1} parent=19 // pred_region
          %p193 = scmp.lt.s32.totalorder %s20, 1
          %s194 = scalar_select %p193, %s20, 1
          %s195 = smul.addr %s194, 4
          %s196 = smul.addr %s195, 8
          %s197 = scalar_lea.vmem %s1, %s196
        $region28: #{tpu_custom_call.1} parent=19 // pred_fallthru
          _
        // Predicated region
        $region29: #{tpu_custom_call.1} parent=19 // pred_check
          %p198 = pneg %p101
        $region30: #{tpu_custom_call.1} parent=19 // pred_check_branch
          %200 = sbr.rel (%p198) target = $region32
        $region31: #{tpu_custom_call.1} parent=19 // pred_region
          %s201 = smul.u32 2, %s21
          %p202 = scmp.lt.s32.totalorder %s20, 1
          %s203 = scalar_select %p202, %s20, 1
          %p204 = scmp.lt.s32.totalorder %s201, 1
          %s205 = scalar_select %p204, %s201, 1
          %s206 = smul.addr %s203, 2
          %s207 = sadd.s32 %s205, %s206
          %s208 = smul.addr %s207, 8
          %s209 = scalar_lea.vmem %s2, %s208
          %s210 = smul.u32 2, %s21
        $region32: #{tpu_custom_call.1} parent=19 // pred_fallthru
          _
      $region20: #{tpu_custom_call.1} parent=5 // pred_fallthru
        _
      %p211 = scmp.le.s32.totalorder 1, %s13
      %p212 = scmp.lt.s32.totalorder %s13, 3
      %p213 = pnand %p211, %p212
      %p214 = pneg %p213
      // Predicated region
      $region33: #{tpu_custom_call.1} parent=5 // pred_check
        _
      $region34: #{tpu_custom_call.1} parent=5 // pred_check_branch
        %216 = sbr.rel (%p213) target = $region36
      $region35: #{tpu_custom_call.1} parent=5 // pred_region
        %s217 = ssub.s32 %s13, 1
        %p218 = scmp.lt.s32.totalorder %s22, 1
        %s219 = scalar_select %p218, %s22, 1
        %p220 = scmp.lt.s32.totalorder %s23, 0
        %s221 = scalar_select %p220, %s23, 0
        %s222 = smul.addr %s221, 4
        %s223 = smul.addr %s219, 4
        %s224 = sadd.s32 %s222, %s223
        %s225 = smul.addr %s224, 8
        %s226 = scalar_lea.vmem %s0, %s225
        %p227 = pneg %p53
        %p228 = pneg %p50
        %p229 = scmp.lt.s32.totalorder %s22, 1
        %s230 = scalar_select %p229, %s22, 1
        %s231 = smul.addr %s230, 4
        %s232 = smul.addr %s231, 8
        %s233 = scalar_lea.vmem %s1, %s232
        %p234 = pneg %p79
        %p235 = pneg %p76
        %s236 = smul.u32 2, %s23
        %p237 = scmp.lt.s32.totalorder %s22, 1
        %s238 = scalar_select %p237, %s22, 1
        %p239 = scmp.lt.s32.totalorder %s236, 1
        %s240 = scalar_select %p239, %s236, 1
        %s241 = smul.addr %s238, 2
        %s242 = sadd.s32 %s240, %s241
        %s243 = smul.addr %s242, 8
        %s244 = scalar_lea.vmem %s2, %s243
        %p245 = pneg %p107
        %p246 = pneg %p104
        %p247 = pneg %p128
        %p248 = pneg %p125
        %p249 = pneg %p156
        %p250 = pneg %p153
        %s251 = sand.u32 %s143, 1
        %s252 = scalar_lea.sflag [#allocation4], %s251
        %s253 = sand.u32 %s143, 1
        %s254 = smul.addr %s253, 16
        %s255 = scalar_lea.vmem [#allocation3], %s254
        %p256 = scmp.lt.s32.totalorder %s22, 1
        %s257 = scalar_select %p256, %s22, 1
        %p258 = scmp.lt.s32.totalorder %s23, 0
        %s259 = scalar_select %p258, %s23, 0
        %s260 = smul.addr %s259, 4
        %s261 = smul.addr %s257, 4
        %s262 = sadd.s32 %s260, %s261
        %s263 = smul.addr %s262, 8
        %s264 = scalar_lea.vmem %s0, %s263
        %p265 = scmp.lt.s32.totalorder %s22, 1
        %s266 = scalar_select %p265, %s22, 1
        %s267 = smul.addr %s266, 4
        %s268 = smul.addr %s267, 8
        %s269 = scalar_lea.vmem %s1, %s268
        %s270 = smul.u32 2, %s23
        %p271 = scmp.lt.s32.totalorder %s22, 1
        %s272 = scalar_select %p271, %s22, 1
        %p273 = scmp.lt.s32.totalorder %s270, 1
        %s274 = scalar_select %p273, %s270, 1
        %s275 = smul.addr %s272, 2
        %s276 = sadd.s32 %s274, %s275
        %s277 = smul.addr %s276, 8
        %s278 = scalar_lea.vmem %s2, %s277
        %s279 = smul.u32 2, %s23
        %s280 = smul.u32 2, %s23
        %v281 = vld [vmem:[%s269] sm:$0xff]
        %v282 = vld [vmem:[%s269 + $0x8] sm:$0xff]
        %v283 = vld [vmem:[%s269 + $0x10] sm:$0xff]
        %v284 = vld [vmem:[%s269 + $0x18] sm:$0xff]
        %v285 = vld [vmem:[%s264] sm:$0xff]
        %v286 = vld [vmem:[%s264 + $0x8] sm:$0xff]
        %v287 = vld [vmem:[%s264 + $0x10] sm:$0xff]
        %v288 = vld [vmem:[%s264 + $0x18] sm:$0xff]
        %v289 = vld [vmem:[%s3] sm:$0x1]
        %291 = vset.pattern.permute.xlu0 0
        %292 = vperm.xlu0 %291, %v285
        %v293 = vpop.permute.xlu0 %292
        %296 = vset.pattern.permute.xlu0 0
        %297 = vperm.xlu0 %296, %v286
        %v298 = vpop.permute.xlu0 %297
        %301 = vset.pattern.permute.xlu0 0
        %302 = vperm.xlu0 %301, %v287
        %v303 = vpop.permute.xlu0 %302
        %306 = vset.pattern.permute.xlu0 0
        %307 = vperm.xlu0 %306, %v288
        %v308 = vpop.permute.xlu0 %307
        %v310 = vadd.f32 %v281, %v293
        %v311 = vadd.f32 %v282, %v298
        %v312 = vadd.f32 %v283, %v303
        %v313 = vadd.f32 %v284, %v308
        %v314 = vtanh.pop %v310
        %v315 = vtanh.pop %v311
        %v316 = vtanh.pop %v312
        %v317 = vtanh.pop %v313
        %vm318 = vcmask 261120
        %v320 = vsel %vm318, %v289, 0
        %322 = vmatpush.msra.mxu0 0.0
        %323 = vmatpush.msra.mxu0 0.0
        %324 = vmatpush.msra.mxu0 0.0
        %325 = vmatpush.msra.mxu0 0.0
        %326 = vmatpush.msra.mxu0 0.0
        %327 = vmatpush.msra.mxu0 0.0
        %328 = vmatpush.msra.mxu0 0.0
        %329 = vmatpush.msra.mxu0 0.0
        %330 = vmatpush.msra.mxu0 0.0
        %331 = vmatpush.msra.mxu0 0.0
        %332 = vmatpush.msra.mxu0 0.0
        %333 = vmatpush.msra.mxu0 0.0
        %334 = vmatpush.msra.mxu0 %v317
        %335 = vmatpush.msra.mxu0 %v316
        %336 = vmatpush.msra.mxu0 %v315
        %337 = vmatpush.msra.mxu0 %v314
        %338 = vmatmul.f32.gmra.mxu0 %v320
        %v339 = vpop.f32.mrf.mxu0
        %v340 = vadd.f32 0.0, %v339
        %341 = vdwg.mxu0
        %342 = vst [vmem:[#allocation2] sm:$0x1] %v340
        %343 = vset.pattern.permute.xlu0 1
        %344 = vperm.xlu0 %343, %v285
        %v345 = vpop.permute.xlu0 %344
        %347 = vset.pattern.permute.xlu0 1
        %348 = vperm.xlu0 %347, %v286
        %v349 = vpop.permute.xlu0 %348
        %351 = vset.pattern.permute.xlu0 1
        %352 = vperm.xlu0 %351, %v287
        %v353 = vpop.permute.xlu0 %352
        %355 = vset.pattern.permute.xlu0 1
        %356 = vperm.xlu0 %355, %v288
        %v357 = vpop.permute.xlu0 %356
        %v359 = vadd.f32 %v281, %v345
        %v360 = vadd.f32 %v282, %v349
        %v361 = vadd.f32 %v283, %v353
        %v362 = vadd.f32 %v284, %v357
        %v363 = vtanh.pop %v359
        %v364 = vtanh.pop %v360
        %v365 = vtanh.pop %v361
        %v366 = vtanh.pop %v362
        %367 = vmatpush.msra.mxu0 0.0
        %368 = vmatpush.msra.mxu0 0.0
        %369 = vmatpush.msra.mxu0 0.0
        %370 = vmatpush.msra.mxu0 0.0
        %371 = vmatpush.msra.mxu0 0.0
        %372 = vmatpush.msra.mxu0 0.0
        %373 = vmatpush.msra.mxu0 0.0
        %374 = vmatpush.msra.mxu0 0.0
        %375 = vmatpush.msra.mxu0 0.0
        %376 = vmatpush.msra.mxu0 0.0
        %377 = vmatpush.msra.mxu0 0.0
        %378 = vmatpush.msra.mxu0 0.0
        %379 = vmatpush.msra.mxu0 %v366
        %380 = vmatpush.msra.mxu0 %v365
        %381 = vmatpush.msra.mxu0 %v364
        %382 = vmatpush.msra.mxu0 %v363
        %383 = vmatmul.f32.gmra.mxu0 %v320
        %v384 = vpop.f32.mrf.mxu0
        %v385 = vadd.f32 0.0, %v384
        %386 = vdwg.mxu0
        %387 = vst [vmem:[#allocation2 + $0x1] sm:$0x1] %v385
        %388 = vset.pattern.permute.xlu0 2
        %389 = vperm.xlu0 %388, %v285
        %v390 = vpop.permute.xlu0 %389
        %392 = vset.pattern.permute.xlu0 2
        %393 = vperm.xlu0 %392, %v286
        %v394 = vpop.permute.xlu0 %393
        %396 = vset.pattern.permute.xlu0 2
        %397 = vperm.xlu0 %396, %v287
        %v398 = vpop.permute.xlu0 %397
        %400 = vset.pattern.permute.xlu0 2
        %401 = vperm.xlu0 %400, %v288
        %v402 = vpop.permute.xlu0 %401
        %v404 = vadd.f32 %v281, %v390
        %v405 = vadd.f32 %v282, %v394
        %v406 = vadd.f32 %v283, %v398
        %v407 = vadd.f32 %v284, %v402
        %v408 = vtanh.pop %v404
        %v409 = vtanh.pop %v405
        %v410 = vtanh.pop %v406
        %v411 = vtanh.pop %v407
        %412 = vmatpush.msra.mxu0 0.0
        %413 = vmatpush.msra.mxu0 0.0
        %414 = vmatpush.msra.mxu0 0.0
        %415 = vmatpush.msra.mxu0 0.0
        %416 = vmatpush.msra.mxu0 0.0
        %417 = vmatpush.msra.mxu0 0.0
        %418 = vmatpush.msra.mxu0 0.0
        %419 = vmatpush.msra.mxu0 0.0
        %420 = vmatpush.msra.mxu0 0.0
        %421 = vmatpush.msra.mxu0 0.0
        %422 = vmatpush.msra.mxu0 0.0
        %423 = vmatpush.msra.mxu0 0.0
        %424 = vmatpush.msra.mxu0 %v411
        %425 = vmatpush.msra.mxu0 %v410
        %426 = vmatpush.msra.mxu0 %v409
        %427 = vmatpush.msra.mxu0 %v408
        %428 = vmatmul.f32.gmra.mxu0 %v320
        %v429 = vpop.f32.mrf.mxu0
        %v430 = vadd.f32 0.0, %v429
        %431 = vdwg.mxu0
        %432 = vst [vmem:[#allocation2 + $0x2] sm:$0x1] %v430
        %433 = vset.pattern.permute.xlu0 3
        %434 = vperm.xlu0 %433, %v285
        %v435 = vpop.permute.xlu0 %434
        %437 = vset.pattern.permute.xlu0 3
        %438 = vperm.xlu0 %437, %v286
        %v439 = vpop.permute.xlu0 %438
        %441 = vset.pattern.permute.xlu0 3
        %442 = vperm.xlu0 %441, %v287
        %v443 = vpop.permute.xlu0 %442
        %445 = vset.pattern.permute.xlu0 3
        %446 = vperm.xlu0 %445, %v288
        %v447 = vpop.permute.xlu0 %446
        %v449 = vadd.f32 %v281, %v435
        %v450 = vadd.f32 %v282, %v439
        %v451 = vadd.f32 %v283, %v443
        %v452 = vadd.f32 %v284, %v447
        %v453 = vtanh.pop %v449
        %v454 = vtanh.pop %v450
        %v455 = vtanh.pop %v451
        %v456 = vtanh.pop %v452
        %457 = vmatpush.msra.mxu0 0.0
        %458 = vmatpush.msra.mxu0 0.0
        %459 = vmatpush.msra.mxu0 0.0
        %460 = vmatpush.msra.mxu0 0.0
        %461 = vmatpush.msra.mxu0 0.0
        %462 = vmatpush.msra.mxu0 0.0
        %463 = vmatpush.msra.mxu0 0.0
        %464 = vmatpush.msra.mxu0 0.0
        %465 = vmatpush.msra.mxu0 0.0
        %466 = vmatpush.msra.mxu0 0.0
        %467 = vmatpush.msra.mxu0 0.0
        %468 = vmatpush.msra.mxu0 0.0
        %469 = vmatpush.msra.mxu0 %v456
        %470 = vmatpush.msra.mxu0 %v455
        %471 = vmatpush.msra.mxu0 %v454
        %472 = vmatpush.msra.mxu0 %v453
        %473 = vmatmul.f32.gmra.mxu0 %v320
        %v474 = vpop.f32.mrf.mxu0
        %v475 = vadd.f32 0.0, %v474
        %476 = vdwg.mxu0
        %477 = vst [vmem:[#allocation2 + $0x3] sm:$0x1] %v475
        %478 = vset.pattern.permute.xlu0 4
        %479 = vperm.xlu0 %478, %v285
        %v480 = vpop.permute.xlu0 %479
        %482 = vset.pattern.permute.xlu0 4
        %483 = vperm.xlu0 %482, %v286
        %v484 = vpop.permute.xlu0 %483
        %486 = vset.pattern.permute.xlu0 4
        %487 = vperm.xlu0 %486, %v287
        %v488 = vpop.permute.xlu0 %487
        %490 = vset.pattern.permute.xlu0 4
        %491 = vperm.xlu0 %490, %v288
        %v492 = vpop.permute.xlu0 %491
        %v494 = vadd.f32 %v281, %v480
        %v495 = vadd.f32 %v282, %v484
        %v496 = vadd.f32 %v283, %v488
        %v497 = vadd.f32 %v284, %v492
        %v498 = vtanh.pop %v494
        %v499 = vtanh.pop %v495
        %v500 = vtanh.pop %v496
        %v501 = vtanh.pop %v497
        %502 = vmatpush.msra.mxu0 0.0
        %503 = vmatpush.msra.mxu0 0.0
        %504 = vmatpush.msra.mxu0 0.0
        %505 = vmatpush.msra.mxu0 0.0
        %506 = vmatpush.msra.mxu0 0.0
        %507 = vmatpush.msra.mxu0 0.0
        %508 = vmatpush.msra.mxu0 0.0
        %509 = vmatpush.msra.mxu0 0.0
        %510 = vmatpush.msra.mxu0 0.0
        %511 = vmatpush.msra.mxu0 0.0
        %512 = vmatpush.msra.mxu0 0.0
        %513 = vmatpush.msra.mxu0 0.0
        %514 = vmatpush.msra.mxu0 %v501
        %515 = vmatpush.msra.mxu0 %v500
        %516 = vmatpush.msra.mxu0 %v499
        %517 = vmatpush.msra.mxu0 %v498
        %518 = vmatmul.f32.gmra.mxu0 %v320
        %v519 = vpop.f32.mrf.mxu0
        %v520 = vadd.f32 0.0, %v519
        %521 = vdwg.mxu0
        %522 = vst [vmem:[#allocation2 + $0x4] sm:$0x1] %v520
        %523 = vset.pattern.permute.xlu0 5
        %524 = vperm.xlu0 %523, %v285
        %v525 = vpop.permute.xlu0 %524
        %527 = vset.pattern.permute.xlu0 5
        %528 = vperm.xlu0 %527, %v286
        %v529 = vpop.permute.xlu0 %528
        %531 = vset.pattern.permute.xlu0 5
        %532 = vperm.xlu0 %531, %v287
        %v533 = vpop.permute.xlu0 %532
        %535 = vset.pattern.permute.xlu0 5
        %536 = vperm.xlu0 %535, %v288
        %v537 = vpop.permute.xlu0 %536
        %v539 = vadd.f32 %v281, %v525
        %v540 = vadd.f32 %v282, %v529
        %v541 = vadd.f32 %v283, %v533
        %v542 = vadd.f32 %v284, %v537
        %v543 = vtanh.pop %v539
        %v544 = vtanh.pop %v540
        %v545 = vtanh.pop %v541
        %v546 = vtanh.pop %v542
        %547 = vmatpush.msra.mxu0 0.0
        %548 = vmatpush.msra.mxu0 0.0
        %549 = vmatpush.msra.mxu0 0.0
        %550 = vmatpush.msra.mxu0 0.0
        %551 = vmatpush.msra.mxu0 0.0
        %552 = vmatpush.msra.mxu0 0.0
        %553 = vmatpush.msra.mxu0 0.0
        %554 = vmatpush.msra.mxu0 0.0
        %555 = vmatpush.msra.mxu0 0.0
        %556 = vmatpush.msra.mxu0 0.0
        %557 = vmatpush.msra.mxu0 0.0
        %558 = vmatpush.msra.mxu0 0.0
        %559 = vmatpush.msra.mxu0 %v546
        %560 = vmatpush.msra.mxu0 %v545
        %561 = vmatpush.msra.mxu0 %v544
        %562 = vmatpush.msra.mxu0 %v543
        %563 = vmatmul.f32.gmra.mxu0 %v320
        %v564 = vpop.f32.mrf.mxu0
        %v565 = vadd.f32 0.0, %v564
        %566 = vdwg.mxu0
        %567 = vst [vmem:[#allocation2 + $0x5] sm:$0x1] %v565
        %568 = vset.pattern.permute.xlu0 6
        %569 = vperm.xlu0 %568, %v285
        %v570 = vpop.permute.xlu0 %569
        %572 = vset.pattern.permute.xlu0 6
        %573 = vperm.xlu0 %572, %v286
        %v574 = vpop.permute.xlu0 %573
        %576 = vset.pattern.permute.xlu0 6
        %577 = vperm.xlu0 %576, %v287
        %v578 = vpop.permute.xlu0 %577
        %580 = vset.pattern.permute.xlu0 6
        %581 = vperm.xlu0 %580, %v288
        %v582 = vpop.permute.xlu0 %581
        %v584 = vadd.f32 %v281, %v570
        %v585 = vadd.f32 %v282, %v574
        %v586 = vadd.f32 %v283, %v578
        %v587 = vadd.f32 %v284, %v582
        %v588 = vtanh.pop %v584
        %v589 = vtanh.pop %v585
        %v590 = vtanh.pop %v586
        %v591 = vtanh.pop %v587
        %592 = vmatpush.msra.mxu0 0.0
        %593 = vmatpush.msra.mxu0 0.0
        %594 = vmatpush.msra.mxu0 0.0
        %595 = vmatpush.msra.mxu0 0.0
        %596 = vmatpush.msra.mxu0 0.0
        %597 = vmatpush.msra.mxu0 0.0
        %598 = vmatpush.msra.mxu0 0.0
        %599 = vmatpush.msra.mxu0 0.0
        %600 = vmatpush.msra.mxu0 0.0
        %601 = vmatpush.msra.mxu0 0.0
        %602 = vmatpush.msra.mxu0 0.0
        %603 = vmatpush.msra.mxu0 0.0
        %604 = vmatpush.msra.mxu0 %v591
        %605 = vmatpush.msra.mxu0 %v590
        %606 = vmatpush.msra.mxu0 %v589
        %607 = vmatpush.msra.mxu0 %v588
        %608 = vmatmul.f32.gmra.mxu0 %v320
        %v609 = vpop.f32.mrf.mxu0
        %v610 = vadd.f32 0.0, %v609
        %611 = vdwg.mxu0
        %612 = vst [vmem:[#allocation2 + $0x6] sm:$0x1] %v610
        %613 = vset.pattern.permute.xlu0 7
        %614 = vperm.xlu0 %613, %v285
        %v615 = vpop.permute.xlu0 %614
        %617 = vset.pattern.permute.xlu0 7
        %618 = vperm.xlu0 %617, %v286
        %v619 = vpop.permute.xlu0 %618
        %621 = vset.pattern.permute.xlu0 7
        %622 = vperm.xlu0 %621, %v287
        %v623 = vpop.permute.xlu0 %622
        %625 = vset.pattern.permute.xlu0 7
        %626 = vperm.xlu0 %625, %v288
        %v627 = vpop.permute.xlu0 %626
        %v629 = vadd.f32 %v281, %v615
        %v630 = vadd.f32 %v282, %v619
        %v631 = vadd.f32 %v283, %v623
        %v632 = vadd.f32 %v284, %v627
        %v633 = vtanh.pop %v629
        %v634 = vtanh.pop %v630
        %v635 = vtanh.pop %v631
        %v636 = vtanh.pop %v632
        %637 = vmatpush.msra.mxu0 0.0
        %638 = vmatpush.msra.mxu0 0.0
        %639 = vmatpush.msra.mxu0 0.0
        %640 = vmatpush.msra.mxu0 0.0
        %641 = vmatpush.msra.mxu0 0.0
        %642 = vmatpush.msra.mxu0 0.0
        %643 = vmatpush.msra.mxu0 0.0
        %644 = vmatpush.msra.mxu0 0.0
        %645 = vmatpush.msra.mxu0 0.0
        %646 = vmatpush.msra.mxu0 0.0
        %647 = vmatpush.msra.mxu0 0.0
        %648 = vmatpush.msra.mxu0 0.0
        %649 = vmatpush.msra.mxu0 %v636
        %650 = vmatpush.msra.mxu0 %v635
        %651 = vmatpush.msra.mxu0 %v634
        %652 = vmatpush.msra.mxu0 %v633
        %653 = vmatmul.f32.gmra.mxu0 %v320
        %v654 = vpop.f32.mrf.mxu0
        %v655 = vadd.f32 0.0, %v654
        %656 = vdwg.mxu0
        %657 = vst [vmem:[#allocation2 + $0x7] sm:$0x1] %v655
        %658 = vset.pattern.permute.xlu0 8
        %659 = vperm.xlu0 %658, %v285
        %v660 = vpop.permute.xlu0 %659
        %662 = vset.pattern.permute.xlu0 8
        %663 = vperm.xlu0 %662, %v286
        %v664 = vpop.permute.xlu0 %663
        %666 = vset.pattern.permute.xlu0 8
        %667 = vperm.xlu0 %666, %v287
        %v668 = vpop.permute.xlu0 %667
        %670 = vset.pattern.permute.xlu0 8
        %671 = vperm.xlu0 %670, %v288
        %v672 = vpop.permute.xlu0 %671
        %v674 = vadd.f32 %v281, %v660
        %v675 = vadd.f32 %v282, %v664
        %v676 = vadd.f32 %v283, %v668
        %v677 = vadd.f32 %v284, %v672
        %v678 = vtanh.pop %v674
        %v679 = vtanh.pop %v675
        %v680 = vtanh.pop %v676
        %v681 = vtanh.pop %v677
        %682 = vmatpush.msra.mxu0 0.0
        %683 = vmatpush.msra.mxu0 0.0
        %684 = vmatpush.msra.mxu0 0.0
        %685 = vmatpush.msra.mxu0 0.0
        %686 = vmatpush.msra.mxu0 0.0
        %687 = vmatpush.msra.mxu0 0.0
        %688 = vmatpush.msra.mxu0 0.0
        %689 = vmatpush.msra.mxu0 0.0
        %690 = vmatpush.msra.mxu0 0.0
        %691 = vmatpush.msra.mxu0 0.0
        %692 = vmatpush.msra.mxu0 0.0
        %693 = vmatpush.msra.mxu0 0.0
        %694 = vmatpush.msra.mxu0 %v681
        %695 = vmatpush.msra.mxu0 %v680
        %696 = vmatpush.msra.mxu0 %v679
        %697 = vmatpush.msra.mxu0 %v678
        %698 = vmatmul.f32.gmra.mxu0 %v320
        %v699 = vpop.f32.mrf.mxu0
        %v700 = vadd.f32 0.0, %v699
        %701 = vdwg.mxu0
        %702 = vst [vmem:[#allocation2 + $0x8] sm:$0x1] %v700
        %703 = vset.pattern.permute.xlu0 9
        %704 = vperm.xlu0 %703, %v285
        %v705 = vpop.permute.xlu0 %704
        %707 = vset.pattern.permute.xlu0 9
        %708 = vperm.xlu0 %707, %v286
        %v709 = vpop.permute.xlu0 %708
        %711 = vset.pattern.permute.xlu0 9
        %712 = vperm.xlu0 %711, %v287
        %v713 = vpop.permute.xlu0 %712
        %715 = vset.pattern.permute.xlu0 9
        %716 = vperm.xlu0 %715, %v288
        %v717 = vpop.permute.xlu0 %716
        %v719 = vadd.f32 %v281, %v705
        %v720 = vadd.f32 %v282, %v709
        %v721 = vadd.f32 %v283, %v713
        %v722 = vadd.f32 %v284, %v717
        %v723 = vtanh.pop %v719
        %v724 = vtanh.pop %v720
        %v725 = vtanh.pop %v721
        %v726 = vtanh.pop %v722
        %727 = vmatpush.msra.mxu0 0.0
        %728 = vmatpush.msra.mxu0 0.0
        %729 = vmatpush.msra.mxu0 0.0
        %730 = vmatpush.msra.mxu0 0.0
        %731 = vmatpush.msra.mxu0 0.0
        %732 = vmatpush.msra.mxu0 0.0
        %733 = vmatpush.msra.mxu0 0.0
        %734 = vmatpush.msra.mxu0 0.0
        %735 = vmatpush.msra.mxu0 0.0
        %736 = vmatpush.msra.mxu0 0.0
        %737 = vmatpush.msra.mxu0 0.0
        %738 = vmatpush.msra.mxu0 0.0
        %739 = vmatpush.msra.mxu0 %v726
        %740 = vmatpush.msra.mxu0 %v725
        %741 = vmatpush.msra.mxu0 %v724
        %742 = vmatpush.msra.mxu0 %v723
        %743 = vmatmul.f32.gmra.mxu0 %v320
        %v744 = vpop.f32.mrf.mxu0
        %v745 = vadd.f32 0.0, %v744
        %746 = vdwg.mxu0
        %747 = vst [vmem:[#allocation2 + $0x9] sm:$0x1] %v745
        %748 = vset.pattern.permute.xlu0 10
        %749 = vperm.xlu0 %748, %v285
        %v750 = vpop.permute.xlu0 %749
        %752 = vset.pattern.permute.xlu0 10
        %753 = vperm.xlu0 %752, %v286
        %v754 = vpop.permute.xlu0 %753
        %756 = vset.pattern.permute.xlu0 10
        %757 = vperm.xlu0 %756, %v287
        %v758 = vpop.permute.xlu0 %757
        %760 = vset.pattern.permute.xlu0 10
        %761 = vperm.xlu0 %760, %v288
        %v762 = vpop.permute.xlu0 %761
        %v764 = vadd.f32 %v281, %v750
        %v765 = vadd.f32 %v282, %v754
        %v766 = vadd.f32 %v283, %v758
        %v767 = vadd.f32 %v284, %v762
        %v768 = vtanh.pop %v764
        %v769 = vtanh.pop %v765
        %v770 = vtanh.pop %v766
        %v771 = vtanh.pop %v767
        %772 = vmatpush.msra.mxu0 0.0
        %773 = vmatpush.msra.mxu0 0.0
        %774 = vmatpush.msra.mxu0 0.0
        %775 = vmatpush.msra.mxu0 0.0
        %776 = vmatpush.msra.mxu0 0.0
        %777 = vmatpush.msra.mxu0 0.0
        %778 = vmatpush.msra.mxu0 0.0
        %779 = vmatpush.msra.mxu0 0.0
        %780 = vmatpush.msra.mxu0 0.0
        %781 = vmatpush.msra.mxu0 0.0
        %782 = vmatpush.msra.mxu0 0.0
        %783 = vmatpush.msra.mxu0 0.0
        %784 = vmatpush.msra.mxu0 %v771
        %785 = vmatpush.msra.mxu0 %v770
        %786 = vmatpush.msra.mxu0 %v769
        %787 = vmatpush.msra.mxu0 %v768
        %788 = vmatmul.f32.gmra.mxu0 %v320
        %v789 = vpop.f32.mrf.mxu0
        %v790 = vadd.f32 0.0, %v789
        %791 = vdwg.mxu0
        %792 = vst [vmem:[#allocation2 + $0xa] sm:$0x1] %v790
        %793 = vset.pattern.permute.xlu0 11
        %794 = vperm.xlu0 %793, %v285
        %v795 = vpop.permute.xlu0 %794
        %797 = vset.pattern.permute.xlu0 11
        %798 = vperm.xlu0 %797, %v286
        %v799 = vpop.permute.xlu0 %798
        %801 = vset.pattern.permute.xlu0 11
        %802 = vperm.xlu0 %801, %v287
        %v803 = vpop.permute.xlu0 %802
        %805 = vset.pattern.permute.xlu0 11
        %806 = vperm.xlu0 %805, %v288
        %v807 = vpop.permute.xlu0 %806
        %v809 = vadd.f32 %v281, %v795
        %v810 = vadd.f32 %v282, %v799
        %v811 = vadd.f32 %v283, %v803
        %v812 = vadd.f32 %v284, %v807
        %v813 = vtanh.pop %v809
        %v814 = vtanh.pop %v810
        %v815 = vtanh.pop %v811
        %v816 = vtanh.pop %v812
        %817 = vmatpush.msra.mxu0 0.0
        %818 = vmatpush.msra.mxu0 0.0
        %819 = vmatpush.msra.mxu0 0.0
        %820 = vmatpush.msra.mxu0 0.0
        %821 = vmatpush.msra.mxu0 0.0
        %822 = vmatpush.msra.mxu0 0.0
        %823 = vmatpush.msra.mxu0 0.0
        %824 = vmatpush.msra.mxu0 0.0
        %825 = vmatpush.msra.mxu0 0.0
        %826 = vmatpush.msra.mxu0 0.0
        %827 = vmatpush.msra.mxu0 0.0
        %828 = vmatpush.msra.mxu0 0.0
        %829 = vmatpush.msra.mxu0 %v816
        %830 = vmatpush.msra.mxu0 %v815
        %831 = vmatpush.msra.mxu0 %v814
        %832 = vmatpush.msra.mxu0 %v813
        %833 = vmatmul.f32.gmra.mxu0 %v320
        %v834 = vpop.f32.mrf.mxu0
        %v835 = vadd.f32 0.0, %v834
        %836 = vdwg.mxu0
        %837 = vst [vmem:[#allocation2 + $0xb] sm:$0x1] %v835
        %838 = vset.pattern.permute.xlu0 12
        %839 = vperm.xlu0 %838, %v285
        %v840 = vpop.permute.xlu0 %839
        %842 = vset.pattern.permute.xlu0 12
        %843 = vperm.xlu0 %842, %v286
        %v844 = vpop.permute.xlu0 %843
        %846 = vset.pattern.permute.xlu0 12
        %847 = vperm.xlu0 %846, %v287
        %v848 = vpop.permute.xlu0 %847
        %850 = vset.pattern.permute.xlu0 12
        %851 = vperm.xlu0 %850, %v288
        %v852 = vpop.permute.xlu0 %851
        %v854 = vadd.f32 %v281, %v840
        %v855 = vadd.f32 %v282, %v844
        %v856 = vadd.f32 %v283, %v848
        %v857 = vadd.f32 %v284, %v852
        %v858 = vtanh.pop %v854
        %v859 = vtanh.pop %v855
        %v860 = vtanh.pop %v856
        %v861 = vtanh.pop %v857
        %862 = vmatpush.msra.mxu0 0.0
        %863 = vmatpush.msra.mxu0 0.0
        %864 = vmatpush.msra.mxu0 0.0
        %865 = vmatpush.msra.mxu0 0.0
        %866 = vmatpush.msra.mxu0 0.0
        %867 = vmatpush.msra.mxu0 0.0
        %868 = vmatpush.msra.mxu0 0.0
        %869 = vmatpush.msra.mxu0 0.0
        %870 = vmatpush.msra.mxu0 0.0
        %871 = vmatpush.msra.mxu0 0.0
        %872 = vmatpush.msra.mxu0 0.0
        %873 = vmatpush.msra.mxu0 0.0
        %874 = vmatpush.msra.mxu0 %v861
        %875 = vmatpush.msra.mxu0 %v860
        %876 = vmatpush.msra.mxu0 %v859
        %877 = vmatpush.msra.mxu0 %v858
        %878 = vmatmul.f32.gmra.mxu0 %v320
        %v879 = vpop.f32.mrf.mxu0
        %v880 = vadd.f32 0.0, %v879
        %881 = vdwg.mxu0
        %882 = vst [vmem:[#allocation2 + $0xc] sm:$0x1] %v880
        %883 = vset.pattern.permute.xlu0 13
        %884 = vperm.xlu0 %883, %v285
        %v885 = vpop.permute.xlu0 %884
        %887 = vset.pattern.permute.xlu0 13
        %888 = vperm.xlu0 %887, %v286
        %v889 = vpop.permute.xlu0 %888
        %891 = vset.pattern.permute.xlu0 13
        %892 = vperm.xlu0 %891, %v287
        %v893 = vpop.permute.xlu0 %892
        %895 = vset.pattern.permute.xlu0 13
        %896 = vperm.xlu0 %895, %v288
        %v897 = vpop.permute.xlu0 %896
        %v899 = vadd.f32 %v281, %v885
        %v900 = vadd.f32 %v282, %v889
        %v901 = vadd.f32 %v283, %v893
        %v902 = vadd.f32 %v284, %v897
        %v903 = vtanh.pop %v899
        %v904 = vtanh.pop %v900
        %v905 = vtanh.pop %v901
        %v906 = vtanh.pop %v902
        %907 = vmatpush.msra.mxu0 0.0
        %908 = vmatpush.msra.mxu0 0.0
        %909 = vmatpush.msra.mxu0 0.0
        %910 = vmatpush.msra.mxu0 0.0
        %911 = vmatpush.msra.mxu0 0.0
        %912 = vmatpush.msra.mxu0 0.0
        %913 = vmatpush.msra.mxu0 0.0
        %914 = vmatpush.msra.mxu0 0.0
        %915 = vmatpush.msra.mxu0 0.0
        %916 = vmatpush.msra.mxu0 0.0
        %917 = vmatpush.msra.mxu0 0.0
        %918 = vmatpush.msra.mxu0 0.0
        %919 = vmatpush.msra.mxu0 %v906
        %920 = vmatpush.msra.mxu0 %v905
        %921 = vmatpush.msra.mxu0 %v904
        %922 = vmatpush.msra.mxu0 %v903
        %923 = vmatmul.f32.gmra.mxu0 %v320
        %v924 = vpop.f32.mrf.mxu0
        %v925 = vadd.f32 0.0, %v924
        %926 = vdwg.mxu0
        %927 = vst [vmem:[#allocation2 + $0xd] sm:$0x1] %v925
        %928 = vset.pattern.permute.xlu0 14
        %929 = vperm.xlu0 %928, %v285
        %v930 = vpop.permute.xlu0 %929
        %932 = vset.pattern.permute.xlu0 14
        %933 = vperm.xlu0 %932, %v286
        %v934 = vpop.permute.xlu0 %933
        %936 = vset.pattern.permute.xlu0 14
        %937 = vperm.xlu0 %936, %v287
        %v938 = vpop.permute.xlu0 %937
        %940 = vset.pattern.permute.xlu0 14
        %941 = vperm.xlu0 %940, %v288
        %v942 = vpop.permute.xlu0 %941
        %v944 = vadd.f32 %v281, %v930
        %v945 = vadd.f32 %v282, %v934
        %v946 = vadd.f32 %v283, %v938
        %v947 = vadd.f32 %v284, %v942
        %v948 = vtanh.pop %v944
        %v949 = vtanh.pop %v945
        %v950 = vtanh.pop %v946
        %v951 = vtanh.pop %v947
        %952 = vmatpush.msra.mxu0 0.0
        %953 = vmatpush.msra.mxu0 0.0
        %954 = vmatpush.msra.mxu0 0.0
        %955 = vmatpush.msra.mxu0 0.0
        %956 = vmatpush.msra.mxu0 0.0
        %957 = vmatpush.msra.mxu0 0.0
        %958 = vmatpush.msra.mxu0 0.0
        %959 = vmatpush.msra.mxu0 0.0
        %960 = vmatpush.msra.mxu0 0.0
        %961 = vmatpush.msra.mxu0 0.0
        %962 = vmatpush.msra.mxu0 0.0
        %963 = vmatpush.msra.mxu0 0.0
        %964 = vmatpush.msra.mxu0 %v951
        %965 = vmatpush.msra.mxu0 %v950
        %966 = vmatpush.msra.mxu0 %v949
        %967 = vmatpush.msra.mxu0 %v948
        %968 = vmatmul.f32.gmra.mxu0 %v320
        %v969 = vpop.f32.mrf.mxu0
        %v970 = vadd.f32 0.0, %v969
        %971 = vdwg.mxu0
        %972 = vst [vmem:[#allocation2 + $0xe] sm:$0x1] %v970
        %973 = vset.pattern.permute.xlu0 15
        %974 = vperm.xlu0 %973, %v285
        %v975 = vpop.permute.xlu0 %974
        %977 = vset.pattern.permute.xlu0 15
        %978 = vperm.xlu0 %977, %v286
        %v979 = vpop.permute.xlu0 %978
        %981 = vset.pattern.permute.xlu0 15
        %982 = vperm.xlu0 %981, %v287
        %v983 = vpop.permute.xlu0 %982
        %985 = vset.pattern.permute.xlu0 15
        %986 = vperm.xlu0 %985, %v288
        %v987 = vpop.permute.xlu0 %986
        %v989 = vadd.f32 %v281, %v975
        %v990 = vadd.f32 %v282, %v979
        %v991 = vadd.f32 %v283, %v983
        %v992 = vadd.f32 %v284, %v987
        %v993 = vtanh.pop %v989
        %v994 = vtanh.pop %v990
        %v995 = vtanh.pop %v991
        %v996 = vtanh.pop %v992
        %997 = vmatpush.msra.mxu0 0.0
        %998 = vmatpush.msra.mxu0 0.0
        %999 = vmatpush.msra.mxu0 0.0
        %1000 = vmatpush.msra.mxu0 0.0
        %1001 = vmatpush.msra.mxu0 0.0
        %1002 = vmatpush.msra.mxu0 0.0
        %1003 = vmatpush.msra.mxu0 0.0
        %1004 = vmatpush.msra.mxu0 0.0
        %1005 = vmatpush.msra.mxu0 0.0
        %1006 = vmatpush.msra.mxu0 0.0
        %1007 = vmatpush.msra.mxu0 0.0
        %1008 = vmatpush.msra.mxu0 0.0
        %1009 = vmatpush.msra.mxu0 %v996
        %1010 = vmatpush.msra.mxu0 %v995
        %1011 = vmatpush.msra.mxu0 %v994
        %1012 = vmatpush.msra.mxu0 %v993
        %1013 = vmatmul.f32.gmra.mxu0 %v320
        %v1014 = vpop.f32.mrf.mxu0
        %v1015 = vadd.f32 0.0, %v1014
        %1016 = vdwg.mxu0
        %1017 = vst [vmem:[#allocation2 + $0xf] sm:$0x1] %v1015
        %v1018 = vlaneseq
        %v1019 = vand.u32 %v1018, 127
        %vm1020 = vcmp.lt.s32.totalorder %v1019, 20
        %v1021 = vld [vmem:[%s278] sm:$0xff]
        %v1022 = vld [vmem:[%s278 + $0x8] sm:$0xff]
        %v1023 = vadd.f32 %v1021, 1e-16
        %v1024 = vadd.f32 %v1022, 1e-16
        %v1025 = vlog2.pop %v1023
        %v1026 = vmul.f32 %v1025, 0.6931472
        %v1027 = vlog2.pop %v1024
        %v1028 = vmul.f32 %v1027, 0.6931472
        %v1029 = vsel %vm1020, %v1026, -1e+30
        %v1030 = vsel %vm1020, %v1028, -1e+30
        %v1031 = vld [vmem:[#allocation2] sm:$0xff]
        %v1032 = vld [vmem:[#allocation2 + $0x8] sm:$0xff]
        %v1033 = vadd.f32 %v1031, %v1029
        %v1034 = vadd.f32 %v1032, %v1030
        %1035 = vmax.xlane.f32.xlu0 %v1033
        %v1036 = vpop.xlane.xlu0 %1035
        %1037 = vmax.xlane.f32.xlu0 %v1034
        %v1038 = vpop.xlane.xlu0 %1037
        %v1039 = vsub.f32 %v1033, %v1036
        %v1040 = vsub.f32 %v1034, %v1038
        %v1041 = vmul.f32 %v1039, 1.442695
        %v1042 = vpow.pop %v1041
        %v1043 = vmul.f32 %v1040, 1.442695
        %v1044 = vpow.pop %v1043
        %1045 = vadd.xlane.f32.xlu0 %v1042
        %v1046 = vpop.xlane.xlu0 %1045
        %1047 = vadd.xlane.f32.xlu0 %v1044
        %v1048 = vpop.xlane.xlu0 %1047
        %v1049 = vlog2.pop %v1046
        %v1050 = vmul.f32 %v1049, 0.6931472
        %v1051 = vlog2.pop %v1048
        %v1052 = vmul.f32 %v1051, 0.6931472
        %v1053 = vadd.f32 %v1050, %v1036
        %v1054 = vadd.f32 %v1052, %v1038
        %v1055 = vsub.f32 %v1033, %v1053
        %v1056 = vsub.f32 %v1034, %v1054
        %1057 = vst [vmem:[%s255] sm:$0xff] %v1055
        %1058 = vst [vmem:[%s255 + $0x8] sm:$0xff] %v1056
        %s1059 = sand.u32 %s143, 1
        %s1060 = scalar_lea.sflag [#allocation4], %s1059
        %s1061 = sand.u32 %s143, 1
        %s1062 = smul.addr %s1061, 16
        %s1063 = scalar_lea.vmem [#allocation3], %s1062
        // Predicated region
        $region37: #{tpu_custom_call.1} parent=35 // pred_check
          %p1064 = pneg %p153
        $region38: #{tpu_custom_call.1} parent=35 // pred_check_branch
          %1066 = sbr.rel (%p1064) target = $region40
        $region39: #{tpu_custom_call.1} parent=35 // pred_region
          %s1067 = smul.u32 2, %s23
          %1069 = vsyncadd %s1060, 0
          %s1070 = smul.addr %s22, 2
          %s1071 = sadd.s32 %s1067, %s1070
          %s1072 = smul.addr %s1071, 8
          %s1073 = scalar_lea.hbm %s4, %s1072
          %s1074 = sshll.u32 %s1063, 4
          %s1075 = int_to_ptr.vmem [resolvable:$true] %s1074
          %s1076 = sshll.u32 %s1073, 4
          %s1077 = int_to_ptr.hbm [resolvable:$true] %s1076
          %1082 = dma.vmem_to_hbm [thread:$0]  %s1075, 256, %s1077, %s1060, 128, 128, 8
        $region40: #{tpu_custom_call.1} parent=35 // pred_fallthru
          _
      $region36: #{tpu_custom_call.1} parent=5 // pred_fallthru
        _
      %p1083 = scmp.le.s32.totalorder 2, %s13
      // Predicated region
      $region41: #{tpu_custom_call.1} parent=5 // pred_check
        %p1084 = pneg %p1083
      $region42: #{tpu_custom_call.1} parent=5 // pred_check_branch
        %1086 = sbr.rel (%p1084) target = $region44
      $region43: #{tpu_custom_call.1} parent=5 // pred_region
        %s1087 = ssub.s32 %s13, 2
        // Predicated region
        $region45: #{tpu_custom_call.1} parent=43 // pred_check
          %p1088 = pneg %p159
        $region46: #{tpu_custom_call.1} parent=43 // pred_check_branch
          %1090 = sbr.rel (%p1088) target = $region48
        $region47: #{tpu_custom_call.1} parent=43 // pred_region
          %s1091 = sand.u32 %s144, 1
          %s1092 = scalar_lea.sflag [#allocation4], %s1091
          %s1093 = sand.u32 %s144, 1
          %s1094 = smul.addr %s1093, 16
          %s1095 = scalar_lea.vmem [#allocation3], %s1094
          %1097 = dma.done %s1092, 256
        $region48: #{tpu_custom_call.1} parent=43 // pred_fallthru
          _
      $region44: #{tpu_custom_call.1} parent=5 // pred_fallthru
        _
    $region6: #{tpu_custom_call.1} parent=1 // loop_footer
      %s17 = sadd.s32 1, %s13
    $region7: #{tpu_custom_call.1} parent=1 // loop_footer_branch
      %12 = sbr.rel target = $region3
    $region8: #{tpu_custom_call.1} parent=1 // loop_exit
      _
    %1098 = vsyncpa [#allocation4], 1
    %s1099 = scalar_lea.sflag [#allocation4], 1
    %1100 = vsyncpa %s1099, 1

</llo_original>
